<compile_context>
chip_gen: v7x
topology: tpu7x:2x2x1
jax: 0.10.0
libtpu: 0.0.40
codegen_flags: <defaults>
</compile_context>

<pallas_src>
import jax
import jax.numpy as jnp
from jax.experimental import pallas as pl
from jax.experimental.pallas import tpu as pltpu

SENSOR_RATIO = 0.5  # TODO(synk): SENSOR_RATIO is undefined in the reference; fixed to 0.5 (>0, so it may be folded into the sensor-branch weights).


# ----------------------------------------------------------------------------
# Pallas kernel, transposed (channels x spatial) layout:
#   out(C, tm) = relu(Wv'(C,Cv) @ v(Cv,tm) + bv) + relu(A(C,K) @ Rt(K,tm) + bs)
# with Wv' = diag(bn_v_scale) @ Wv^T
#      A   = (SENSOR_RATIO * diag(bn_s_scale) @ Ws^T) @ s_small   (tiny, per batch)
#      Rt  = separable bilinear-resize matrix (K = Hs*Ws source positions)
#      bv  = bn_v_shift,   bs = SENSOR_RATIO * bn_s_shift
# (all folded at trace time in the wrapper; see _prepare_operands).
# ----------------------------------------------------------------------------
def _fusion_kernel(v_ref, wv_ref, bv_ref, a_ref, rt_ref, bs_ref, o_ref):
    v_adj = jnp.dot(wv_ref[...], v_ref[...], preferred_element_type=jnp.float32)
    v_adj = jnp.maximum(v_adj + bv_ref[...], 0.0)
    s_adj = jnp.dot(a_ref[...], rt_ref[...], preferred_element_type=jnp.float32)
    s_adj = jnp.maximum(s_adj + bs_ref[...], 0.0)
    o_ref[...] = (v_adj + s_adj).astype(o_ref.dtype)


def _choose_tile(hw, max_tile):
    """Lane tile tm (multiple of 128, <= max_tile) and padded HW such that tm | hw_pad."""
    assert max_tile % 128 == 0
    tm = min(max_tile, pl.cdiv(hw, 128) * 128)
    hw_pad = pl.cdiv(hw, tm) * tm
    return tm, hw_pad


def fused_channel_adjust(v3, wv_f, bv, a, rt, bs, *, tm, out_dtype=jnp.bfloat16):
    """v3: (B, Cv, HWp) bf16; wv_f: (C, Cv) bf16; bv/bs: (C, 1) f32;
    a: (B, C, K) bf16; rt: (K, HWp) bf16.  HWp % tm == 0, tm % 128 == 0."""
    B, Cv, HWp = v3.shape
    C = wv_f.shape[0]
    K = rt.shape[0]
    assert HWp % tm == 0 and tm % 128 == 0
    grid = (B, HWp // tm)
    # Weight / shift / tiny sensor operands use constant index_maps so they stay
    # VMEM-resident; pipeline_mode=pl.Buffered(1) would shave a few KB of VMEM
    # but is skipped (not the binding constraint at these sizes).
    return pl.pallas_call(
        _fusion_kernel,
        out_shape=jax.ShapeDtypeStruct((B, C, HWp), out_dtype),
        grid_spec=pltpu.PrefetchScalarGridSpec(
            num_scalar_prefetch=0,
            grid=grid,
            in_specs=[
                pl.BlockSpec((None, Cv, tm), lambda b, i: (b, 0, i)),  # visual (Cv, tm) bf16
                pl.BlockSpec((C, Cv), lambda b, i: (0, 0)),            # folded visual weight
                pl.BlockSpec((C, 1), lambda b, i: (0, 0)),             # folded visual shift
                pl.BlockSpec((None, C, K), lambda b, i: (b, 0, 0)),    # conv'd tiny sensor map
                pl.BlockSpec((K, tm), lambda b, i: (0, i)),            # resize matrix slice
                pl.BlockSpec((C, 1), lambda b, i: (0, 0)),             # folded sensor shift
            ],
            out_specs=pl.BlockSpec((None, C, tm), lambda b, i: (b, 0, i)),
        ),
        compiler_params=pltpu.CompilerParams(
            dimension_semantics=("parallel", "parallel"),
            vmem_limit_bytes=48 * 1024 * 1024,  # above v5e's 16 MiB default, below v7x's 64 MiB physical
        ),
    )(v3, wv_f, bv, a, rt, bs)


# ----------------------------------------------------------------------------
# Glue (plain JAX)
# ----------------------------------------------------------------------------
def base_sensor(sensors, w, b, C, Hs, Ws):
    # TODO(synk): BaseSensor is undefined in the reference; synthesized as
    # Linear + ReLU producing a (B, C, Hs, Ws) sensor feature map.
    h = jnp.maximum(sensors @ w + b, 0.0)
    return h.reshape(sensors.shape[0], C, Hs, Ws)


def bilinear_matrix(in_size, out_size):
    """Interpolation matrix matching F.interpolate(mode='bilinear', align_corners=False)."""
    scale = in_size / out_size
    dst = jnp.arange(out_size, dtype=jnp.float32)
    src = jnp.maximum((dst + 0.5) * scale - 0.5, 0.0)
    i0 = jnp.clip(jnp.floor(src).astype(jnp.int32), 0, in_size - 1)
    i1 = jnp.minimum(i0 + 1, in_size - 1)
    lam = src - i0.astype(jnp.float32)
    rows = jnp.arange(out_size)
    m = jnp.zeros((out_size, in_size), dtype=jnp.float32)
    m = m.at[rows, i0].add(1.0 - lam)
    m = m.at[rows, i1].add(lam)
    return m


def fold_bn(gamma, beta, running_mean, running_var, eps=1e-5):
    # TODO(synk): BatchNorm reproduced in eval mode (running stats folded into
    # per-channel scale/shift); training-mode batch statistics are not computed.
    scale = gamma / jnp.sqrt(running_var + eps)
    shift = beta - running_mean * scale
    return scale, shift


def _prepare_operands(v_features, sensors, params, *, max_tile=16384):
    """BaseSensor + trace-time folding of BN/SENSOR_RATIO/sensor-conv + resize matrix + bf16 casts."""
    B, Cv, H, W = v_features.shape
    C, Hs, Ws = params["channels"], params["Hs"], params["Ws"]
    HW = H * W

    # s_features = self.s_model(sensors): (B, C, Hs, Ws)
    s_small = base_sensor(sensors, params["bs_w"], params["bs_b"], C, Hs, Ws)

    # Fold BN scale (and SENSOR_RATIO — valid since SENSOR_RATIO > 0) into the
    # transposed 1x1-conv weights at trace time.
    wv_f = params["v_scale"][:, None] * params["wv"].T                 # (C, Cv)
    ws_f = SENSOR_RATIO * params["s_scale"][:, None] * params["ws"].T  # (C, C)
    bv = params["v_shift"][:, None].astype(jnp.float32)                # (C, 1)
    bs = (SENSOR_RATIO * params["s_shift"])[:, None].astype(jnp.float32)

    # 1x1 conv commutes with the (linear) bilinear resize, and the resize rows
    # sum to 1 so the BN shift may be added after the resize:
    #   relu(Ws'.resize(s) + bs) == relu(resize(Ws'.s) + bs)      (ReLU stays after resize)
    # Apply Ws' to the tiny map here; the kernel does the resize as a matmul.
    a = jnp.einsum("ck,bkp->bcp", ws_f, s_small.reshape(B, C, Hs * Ws))  # (B, C, Hs*Ws)

    # Separable resize matrix, transposed so the kernel contracts over K=Hs*Ws:
    #   rt[y*Ws+x, h*W+w] = Rh[h, y] * Rw[w, x]
    Rh = bilinear_matrix(Hs, H)  # (H, Hs); identity when Hs == H
    Rw = bilinear_matrix(Ws, W)  # (W, Ws)
    rt = jnp.einsum("hy,wx->yxhw", Rh, Rw).reshape(Hs * Ws, HW)

    # NCHW stays NCHW: flatten spatial only; pad HW so tiles are 128-multiples
    # (guarantees lane-dense stores, no masked vst.msk).
    tm, HW_pad = _choose_tile(HW, max_tile)
    v3 = v_features.reshape(B, Cv, HW)
    if HW_pad != HW:
        pad = HW_pad - HW
        v3 = jnp.pad(v3, ((0, 0), (0, 0), (0, pad)))
        rt = jnp.pad(rt, ((0, 0), (0, pad)))

    meta = dict(B=B, C=C, H=H, W=W, HW=HW, HW_pad=HW_pad, tm=tm)
    return (v3.astype(jnp.bfloat16), wv_f.astype(jnp.bfloat16), bv,
            a.astype(jnp.bfloat16), rt.astype(jnp.bfloat16), bs, meta)


def sensor_vision_fusion_forward(v_features, sensors, params, *, max_tile=16384,
                                 out_dtype=jnp.bfloat16):
    # NOTE: this script exercises the Cv != channels path, so the
    # visual_channel_adjust branch is always taken (as in the reference when
    # v_features.size(1) != self.channels).
    # TODO(synk): the Cv == channels branch (identity visual path) is not wired up here.
    # TODO(synk): output is bf16 to halve HBM store traffic; the PyTorch module would
    # return f32 — cast at the consumer if the interface strictly requires it.
    v3, wv_f, bv, a, rt, bs, meta = _prepare_operands(
        v_features, sensors, params, max_tile=max_tile)
    out3 = fused_channel_adjust(v3, wv_f, bv, a, rt, bs, tm=meta["tm"], out_dtype=out_dtype)
    if meta["HW_pad"] != meta["HW"]:
        out3 = out3[:, :, :meta["HW"]]
    return out3.reshape(meta["B"], meta["C"], meta["H"], meta["W"])


# ----------------------------------------------------------------------------
# References for correctness checking
# ----------------------------------------------------------------------------
def quantized_reference(v_features, sensors, params, *, max_tile=16384):
    """Same math as the kernel (including bf16 quantization of all operands and
    of the output), in plain JAX."""
    v3, wv_f, bv, a, rt, bs, meta = _prepare_operands(
        v_features, sensors, params, max_tile=max_tile)
    v_adj = jnp.maximum(
        jnp.einsum("ck,bkm->bcm", wv_f.astype(jnp.float32), v3.astype(jnp.float32)) + bv, 0.0)
    s_adj = jnp.maximum(
        jnp.einsum("bck,km->bcm", a.astype(jnp.float32), rt.astype(jnp.float32)) + bs, 0.0)
    out3 = (v_adj + s_adj).astype(jnp.bfloat16)
    if meta["HW_pad"] != meta["HW"]:
        out3 = out3[:, :, :meta["HW"]]
    return out3.reshape(meta["B"], meta["C"], meta["H"], meta["W"])


def reference_forward(v_features, sensors, params):
    """Module-faithful pure-f32 reference (conv after resize, no folding)."""
    B, Cv, H, W = v_features.shape
    C, Hs, Ws = params["channels"], params["Hs"], params["Ws"]
    s = base_sensor(sensors, params["bs_w"], params["bs_b"], C, Hs, Ws)
    if (Hs, Ws) != (H, W):
        Rh = bilinear_matrix(Hs, H)
        Rw = bilinear_matrix(Ws, W)
        s = jnp.einsum("hy,bcyx,wx->bchw", Rh, s, Rw)
    v_flat = jnp.transpose(v_features, (0, 2, 3, 1)).reshape(B * H * W, Cv)
    s_flat = jnp.transpose(s, (0, 2, 3, 1)).reshape(B * H * W, C)
    v_adj = jnp.maximum((v_flat @ params["wv"]) * params["v_scale"] + params["v_shift"], 0.0)
    s_adj = jnp.maximum((s_flat @ params["ws"]) * params["s_scale"] + params["s_shift"], 0.0)
    out = v_adj + SENSOR_RATIO * s_adj
    return jnp.transpose(out.reshape(B, H, W, C), (0, 3, 1, 2))


# ----------------------------------------------------------------------------
# Deterministic parameter construction + run
# ----------------------------------------------------------------------------
def make_params(key, C, Cv, Ds, Hs, Ws):
    ks = jax.random.split(key, 12)
    # BaseSensor (synthetic) linear
    bs_w = 0.1 * jax.random.normal(ks[0], (Ds, C * Hs * Ws), jnp.float32)
    bs_b = 0.01 * jax.random.normal(ks[1], (C * Hs * Ws,), jnp.float32)
    # visual_channel_adjust: Conv2d(Cv, C, 1, bias=False) weight, stored transposed (Cv, C)
    wv = jax.random.normal(ks[2], (Cv, C), jnp.float32) / jnp.sqrt(Cv)
    # sensor_channel_adjust: Conv2d(C, C, 1, bias=False) weight, stored transposed (C, C)
    ws = jax.random.normal(ks[3], (C, C), jnp.float32) / jnp.sqrt(C)
    # BatchNorm parameters (non-trivial, deterministic)
    v_scale, v_shift = fold_bn(
        1.0 + 0.1 * jax.random.normal(ks[4], (C,), jnp.float32),
        0.05 * jax.random.normal(ks[5], (C,), jnp.float32),
        0.1 * jax.random.normal(ks[6], (C,), jnp.float32),
        1.0 + 0.1 * jax.random.uniform(ks[7], (C,), jnp.float32))
    s_scale, s_shift = fold_bn(
        1.0 + 0.1 * jax.random.normal(ks[8], (C,), jnp.float32),
        0.05 * jax.random.normal(ks[9], (C,), jnp.float32),
        0.1 * jax.random.normal(ks[10], (C,), jnp.float32),
        1.0 + 0.1 * jax.random.uniform(ks[11], (C,), jnp.float32))
    return dict(channels=C, Hs=Hs, Ws=Ws, bs_w=bs_w, bs_b=bs_b,
                wv=wv, ws=ws, v_scale=v_scale, v_shift=v_shift,
                s_scale=s_scale, s_shift=s_shift)


if __name__ == "__main__":
    B, Cv, H, W = 2, 16, 16, 16       # visual features (NCHW), Cv != channels
    C, Ds, Hs, Ws = 32, 8, 4, 4       # fusion channels, sensor dim, sensor spatial

    key = jax.random.PRNGKey(0)
    k_param, k_v, k_s = jax.random.split(key, 3)
    params = make_params(k_param, C, Cv, Ds, Hs, Ws)

    v_features = jax.random.normal(k_v, (B, Cv, H, W), jnp.float32)
    sensors = jax.random.normal(k_s, (B, Ds), jnp.float32)

    fwd = jax.jit(lambda v, s: sensor_vision_fusion_forward(v, s, params))
    out = jax.block_until_ready(fwd(v_features, sensors))
    assert out.shape == (B, C, H, W), out.shape
    assert out.dtype == jnp.bfloat16, out.dtype

    # Tight check: kernel vs. identical bf16-quantized math in plain JAX.
    ref_q = jax.block_until_ready(quantized_reference(v_features, sensors, params))
    out_f32 = out.astype(jnp.float32)
    assert jnp.allclose(out_f32, ref_q.astype(jnp.float32), atol=2e-2, rtol=2e-2), \
        float(jnp.max(jnp.abs(out_f32 - ref_q.astype(jnp.float32))))

    # Loose check: kernel vs. pure-f32 module semantics (tolerance covers the
    # deliberate bf16 weight/activation/output quantization in the kernel path).
    ref = jax.block_until_ready(reference_forward(v_features, sensors, params))
    assert jnp.allclose(out_f32, ref, atol=1e-1, rtol=5e-2), \
        float(jnp.max(jnp.abs(out_f32 - ref)))

    print("KERNEL_OK")
</pallas_src>

<mosaic_0001>
module attributes {stable_mosaic.version = 11 : i64} {
  func.func private @main(%arg0: i32) attributes {dimension_semantics = [#tpu.dimension_semantics<core_parallel>], iteration_bounds = array<i64: 2>, tpu.core_type = #tpu.core_type<sc_scalar_subcore>, window_params = []} {
    return
  }
}

module attributes {stable_mosaic.version = 11 : i64} {
  func.func private @main(%arg0: i32) attributes {dimension_semantics = [#tpu.dimension_semantics<core_parallel>], iteration_bounds = array<i64: 2>, tpu.core_type = #tpu.core_type<sc_scalar_subcore>, window_params = []} {
    return
  }
}

module attributes {stable_mosaic.version = 11 : i64} {
  func.func @_fusion_kernel(%arg0: i32, %arg1: i32, %arg2: memref<1x16x256xbf16, #tpu.memory_space<vmem>>, %arg3: memref<32x16xbf16, #tpu.memory_space<vmem>>, %arg4: memref<32x1xf32, #tpu.memory_space<vmem>>, %arg5: memref<1x32x16xbf16, #tpu.memory_space<vmem>>, %arg6: memref<16x256xbf16, #tpu.memory_space<vmem>>, %arg7: memref<32x1xf32, #tpu.memory_space<vmem>>, %arg8: memref<1x32x256xbf16, #tpu.memory_space<vmem>>) attributes {dimension_semantics = [#tpu.dimension_semantics<parallel>, #tpu.dimension_semantics<parallel>], iteration_bounds = array<i64: 2, 1>, scalar_prefetch = 0 : i64, scratch_operands = 0 : i64, tpu.core_type = #tpu.core_type<tc>, window_params = [{transform_indices = @transform_0, window_bounds = array<i64: 1, 16, 256>}, {pipeline_mode = #tpu.pipeline_mode<synchronous>, transform_indices = @transform_1, window_bounds = array<i64: 32, 16>}, {pipeline_mode = #tpu.pipeline_mode<synchronous>, transform_indices = @transform_2, window_bounds = array<i64: 32, 1>}, {transform_indices = @transform_3, window_bounds = array<i64: 1, 32, 16>}, {transform_indices = @transform_4, window_bounds = array<i64: 16, 256>}, {pipeline_mode = #tpu.pipeline_mode<synchronous>, transform_indices = @transform_5, window_bounds = array<i64: 32, 1>}, {transform_indices = @transform_6, window_bounds = array<i64: 1, 32, 256>}]} {
    %c0 = arith.constant 0 : index
    %c0_0 = arith.constant 0 : index
    %0 = vector.load %arg3[%c0, %c0_0] : memref<32x16xbf16, #tpu.memory_space<vmem>>, vector<32x16xbf16>
    %c0_1 = arith.constant 0 : index
    %c0_2 = arith.constant 0 : index
    %c0_3 = arith.constant 0 : index
    %1 = vector.load %arg2[%c0_1, %c0_2, %c0_3] : memref<1x16x256xbf16, #tpu.memory_space<vmem>>, vector<1x16x256xbf16>
    %2 = vector.shape_cast %1 : vector<1x16x256xbf16> to vector<16x256xbf16>
    %cst = arith.constant dense<0.000000e+00> : vector<32x256xf32>
    %3 = tpu.matmul %0, %2, %cst {dimension_numbers = #tpu.dot_dimension_numbers<[1], [0], [0], [1], [0, 0, 1, 1], [], []>} : vector<32x16xbf16>, vector<16x256xbf16>, vector<32x256xf32> -> vector<32x256xf32>
    %c0_4 = arith.constant 0 : index
    %c0_5 = arith.constant 0 : index
    %4 = vector.load %arg4[%c0_4, %c0_5] : memref<32x1xf32, #tpu.memory_space<vmem>>, vector<32x1xf32>
    %5 = vector.broadcast %4 : vector<32x1xf32> to vector<32x256xf32>
    %6 = arith.addf %3, %5 : vector<32x256xf32>
    %cst_6 = arith.constant 0.000000e+00 : f32
    %7 = vector.broadcast %cst_6 : f32 to vector<32x256xf32>
    %8 = arith.maximumf %6, %7 : vector<32x256xf32>
    %c0_7 = arith.constant 0 : index
    %c0_8 = arith.constant 0 : index
    %c0_9 = arith.constant 0 : index
    %9 = vector.load %arg5[%c0_7, %c0_8, %c0_9] : memref<1x32x16xbf16, #tpu.memory_space<vmem>>, vector<1x32x16xbf16>
    %10 = vector.shape_cast %9 : vector<1x32x16xbf16> to vector<32x16xbf16>
    %c0_10 = arith.constant 0 : index
    %c0_11 = arith.constant 0 : index
    %11 = vector.load %arg6[%c0_10, %c0_11] : memref<16x256xbf16, #tpu.memory_space<vmem>>, vector<16x256xbf16>
    %cst_12 = arith.constant dense<0.000000e+00> : vector<32x256xf32>
    %12 = tpu.matmul %10, %11, %cst_12 {dimension_numbers = #tpu.dot_dimension_numbers<[1], [0], [0], [1], [0, 0, 1, 1], [], []>} : vector<32x16xbf16>, vector<16x256xbf16>, vector<32x256xf32> -> vector<32x256xf32>
    %c0_13 = arith.constant 0 : index
    %c0_14 = arith.constant 0 : index
    %13 = vector.load %arg7[%c0_13, %c0_14] : memref<32x1xf32, #tpu.memory_space<vmem>>, vector<32x1xf32>
    %14 = vector.broadcast %13 : vector<32x1xf32> to vector<32x256xf32>
    %15 = arith.addf %12, %14 : vector<32x256xf32>
    %cst_15 = arith.constant 0.000000e+00 : f32
    %16 = vector.broadcast %cst_15 : f32 to vector<32x256xf32>
    %17 = arith.maximumf %15, %16 : vector<32x256xf32>
    %18 = arith.addf %8, %17 : vector<32x256xf32>
    %19 = arith.truncf %18 : vector<32x256xf32> to vector<32x256xbf16>
    %c0_16 = arith.constant 0 : index
    %c0_17 = arith.constant 0 : index
    %c0_18 = arith.constant 0 : index
    %20 = vector.load %arg8[%c0_16, %c0_17, %c0_18] : memref<1x32x256xbf16, #tpu.memory_space<vmem>>, vector<1x32x256xbf16>
    %21 = vector.shape_cast %20 : vector<1x32x256xbf16> to vector<32x256xbf16>
    %22 = vector.shape_cast %19 : vector<32x256xbf16> to vector<1x32x256xbf16>
    tpu.vector_store %arg8[%c0_16, %c0_17, %c0_18], %22 {strides = array<i32>} : memref<1x32x256xbf16, #tpu.memory_space<vmem>>, vector<1x32x256xbf16>,
    return
  }
  func.func @transform_0(%arg0: i32, %arg1: i32) -> (i32, i32, i32) {
    %c0_i32 = arith.constant 0 : i32
    %c0_i32_0 = arith.constant 0 : i32
    return %arg0, %c0_i32, %arg1 : i32, i32, i32
  }
  func.func @transform_1(%arg0: i32, %arg1: i32) -> (i32, i32) {
    %c0_i32 = arith.constant 0 : i32
    %c0_i32_0 = arith.constant 0 : i32
    %c0_i32_1 = arith.constant 0 : i32
    return %c0_i32, %c0_i32_0 : i32, i32
  }
  func.func @transform_2(%arg0: i32, %arg1: i32) -> (i32, i32) {
    %c0_i32 = arith.constant 0 : i32
    %c0_i32_0 = arith.constant 0 : i32
    %c0_i32_1 = arith.constant 0 : i32
    return %c0_i32, %c0_i32_0 : i32, i32
  }
  func.func @transform_3(%arg0: i32, %arg1: i32) -> (i32, i32, i32) {
    %c0_i32 = arith.constant 0 : i32
    %c0_i32_0 = arith.constant 0 : i32
    %c0_i32_1 = arith.constant 0 : i32
    return %arg0, %c0_i32, %c0_i32_0 : i32, i32, i32
  }
  func.func @transform_4(%arg0: i32, %arg1: i32) -> (i32, i32) {
    %c0_i32 = arith.constant 0 : i32
    %c0_i32_0 = arith.constant 0 : i32
    return %c0_i32, %arg1 : i32, i32
  }
  func.func @transform_5(%arg0: i32, %arg1: i32) -> (i32, i32) {
    %c0_i32 = arith.constant 0 : i32
    %c0_i32_0 = arith.constant 0 : i32
    %c0_i32_1 = arith.constant 0 : i32
    return %c0_i32, %c0_i32_0 : i32, i32
  }
  func.func @transform_6(%arg0: i32, %arg1: i32) -> (i32, i32, i32) {
    %c0_i32 = arith.constant 0 : i32
    %c0_i32_0 = arith.constant 0 : i32
    return %arg0, %c0_i32, %arg1 : i32, i32, i32
  }
}

</mosaic_0001>

<llo_original>
// kernel: _lambda_.1
$region0: #{_lambda_.1}
  #allocation0 [shape = 'u32[]', space=smem, size = 0x4, offset = 0x4, fixed_abs, tag = 'smem constant byte address 0x4 - core index']
  #allocation1 [shape = 'u32[144,128]{1,0:T(1,128)}', space=vmem, size = 0x12000, scoped, tag = 'internal scratch']
  %s0 = inlined_call_operand.vmem [shape: bf16[2,16,256], index: 0, kind: input, shape index: {}]
  %s1 = inlined_call_operand.vmem [shape: bf16[32,16], index: 1, kind: input, shape index: {}]
  %s2 = inlined_call_operand.vmem [shape: f32[32,1], index: 2, kind: input, shape index: {}]
  %s3 = inlined_call_operand.vmem [shape: bf16[2,32,16], index: 3, kind: input, shape index: {}]
  %s4 = inlined_call_operand.vmem [shape: bf16[16,256], index: 4, kind: input, shape index: {}]
  %s5 = inlined_call_operand.vmem [shape: f32[32,1], index: 5, kind: input, shape index: {}]
  %s6 = inlined_call_operand.vmem [shape: bf16[2,32,256], index: 6, kind: output, shape index: {}]
  %s7 = sld [smem:[#allocation0]]
  $region57: #{_lambda_.1} parent=0
    _
  %s9 = ssub.s32 1, %s7
  %s10 = scalar_select 0, %s9, %s7
  loop: start=0, step=1, limit=4
  $region2: #{_lambda_.1} parent=0 // loop_pre_header
    _
  $region3: #{_lambda_.1} parent=0 // loop_header
    %s12 = sphi 0, %s16
    %p13 = scmp.ge.s32.totalorder %s12, 4
    %s19 = sphi 0, %s31
    %s20 = sphi 0, %s27
    %s21 = sphi 0, %s19
    %s22 = sphi 0, %s20
    %s23 = sphi 0, %s21
    %s24 = sphi 0, %s22
    %s36 = sphi 0, %s38
    %s39 = sphi 0, %s36
    %s40 = sphi 0, %s39
    %s56 = sphi 0, %s40
    %s60 = sphi 0, %s60
    %s62 = sphi 0, %s60
    %s63 = sphi 0, %s62
    %s77 = sphi 0, %s63
    %s81 = sphi 0, %s81
    %s83 = sphi 0, %s81
    %s84 = sphi 0, %s83
    %s98 = sphi 0, %s84
    %s104 = sphi 0, %s106
    %s107 = sphi 0, %s104
    %s108 = sphi 0, %s107
    %s124 = sphi 0, %s108
    %s130 = sphi 0, %s132
    %s133 = sphi 0, %s130
    %s134 = sphi 0, %s133
    %s150 = sphi 0, %s134
    %s154 = sphi 0, %s154
    %s156 = sphi 0, %s154
    %s157 = sphi 0, %s156
    %s171 = sphi 0, %s157
    %s179 = sphi 0, %s181
    %s182 = sphi 0, %s179
    %s183 = sphi 0, %s182
    %s199 = sphi 0, %s183
  $region4: #{_lambda_.1} parent=0 // loop_header_branch
    %15 = sbr.rel (%p13) target = $region8
  $region5: #{_lambda_.1} parent=0 // loop_body
    %s17 = ssub.s32 %s12, 1
    %s18 = ssub.s32 %s12, 2
    %s25 = sadd.s32 1, %s20
    %p26 = scmp.ge.s32.totalorder %s25, 1
    %s27 = scalar_select %p26, 0, %s25
    %s28 = sadd.s32 1, %s19
    %s29 = scalar_select %p26, %s28, %s19
    %p30 = scmp.ge.s32.totalorder %s29, 2
    %s31 = scalar_select %p30, 0, %s29
    %s32 = ssub.s32 %s19, %s31
    %s33 = ssub.s32 %s20, %s27
    %s34 = sor.u32 %s32, %s33
    %p35 = scmp.eq.s32.totalorder %s34, 0
    %s37 = sadd.s32 %s36, 1
    %s38 = scalar_select %p35, %s36, %s37
    %p41 = pneg %p35
    %p42 = scmp.eq.s32.totalorder %s12, 1
    %p43 = por %p41, %p42
    %p44 = scmp.ne.s32.totalorder %s36, %s39
    %p45 = scmp.eq.s32.totalorder %s12, 0
    %p46 = por %p44, %p45
    %p47 = scmp.ne.s32.totalorder %s36, %s39
    %p48 = scmp.eq.s32.totalorder %s17, 1
    %p49 = por %p47, %p48
    %p50 = scmp.ne.s32.totalorder %s39, %s40
    %p51 = scmp.eq.s32.totalorder %s17, 0
    %p52 = por %p50, %p51
    %p53 = scmp.ne.s32.totalorder %s39, %s40
    %p54 = scmp.eq.s32.totalorder %s18, 1
    %p55 = por %p53, %p54
    %p57 = scmp.ne.s32.totalorder %s40, %s56
    %p58 = scmp.eq.s32.totalorder %s18, 0
    %p59 = por %p57, %p58
    %s61 = sadd.s32 %s60, 1
    %p64 = scmp.eq.s32.totalorder %s12, 1
    %p65 = scmp.ne.s32.totalorder %s60, %s62
    %p66 = scmp.eq.s32.totalorder %s12, 0
    %p67 = por %p65, %p66
    %p68 = scmp.ne.s32.totalorder %s60, %s62
    %p69 = scmp.eq.s32.totalorder %s17, 1
    %p70 = por %p68, %p69
    %p71 = scmp.ne.s32.totalorder %s62, %s63
    %p72 = scmp.eq.s32.totalorder %s17, 0
    %p73 = por %p71, %p72
    %p74 = scmp.ne.s32.totalorder %s62, %s63
    %p75 = scmp.eq.s32.totalorder %s18, 1
    %p76 = por %p74, %p75
    %p78 = scmp.ne.s32.totalorder %s63, %s77
    %p79 = scmp.eq.s32.totalorder %s18, 0
    %p80 = por %p78, %p79
    %s82 = sadd.s32 %s81, 1
    %p85 = scmp.eq.s32.totalorder %s12, 1
    %p86 = scmp.ne.s32.totalorder %s81, %s83
    %p87 = scmp.eq.s32.totalorder %s12, 0
    %p88 = por %p86, %p87
    %p89 = scmp.ne.s32.totalorder %s81, %s83
    %p90 = scmp.eq.s32.totalorder %s17, 1
    %p91 = por %p89, %p90
    %p92 = scmp.ne.s32.totalorder %s83, %s84
    %p93 = scmp.eq.s32.totalorder %s17, 0
    %p94 = por %p92, %p93
    %p95 = scmp.ne.s32.totalorder %s83, %s84
    %p96 = scmp.eq.s32.totalorder %s18, 1
    %p97 = por %p95, %p96
    %p99 = scmp.ne.s32.totalorder %s84, %s98
    %p100 = scmp.eq.s32.totalorder %s18, 0
    %p101 = por %p99, %p100
    %s102 = ssub.s32 %s19, %s31
    %p103 = scmp.eq.s32.totalorder %s102, 0
    %s105 = sadd.s32 %s104, 1
    %s106 = scalar_select %p103, %s104, %s105
    %p109 = pneg %p103
    %p110 = scmp.eq.s32.totalorder %s12, 1
    %p111 = por %p109, %p110
    %p112 = scmp.ne.s32.totalorder %s104, %s107
    %p113 = scmp.eq.s32.totalorder %s12, 0
    %p114 = por %p112, %p113
    %p115 = scmp.ne.s32.totalorder %s104, %s107
    %p116 = scmp.eq.s32.totalorder %s17, 1
    %p117 = por %p115, %p116
    %p118 = scmp.ne.s32.totalorder %s107, %s108
    %p119 = scmp.eq.s32.totalorder %s17, 0
    %p120 = por %p118, %p119
    %p121 = scmp.ne.s32.totalorder %s107, %s108
    %p122 = scmp.eq.s32.totalorder %s18, 1
    %p123 = por %p121, %p122
    %p125 = scmp.ne.s32.totalorder %s108, %s124
    %p126 = scmp.eq.s32.totalorder %s18, 0
    %p127 = por %p125, %p126
    %s128 = ssub.s32 %s20, %s27
    %p129 = scmp.eq.s32.totalorder %s128, 0
    %s131 = sadd.s32 %s130, 1
    %s132 = scalar_select %p129, %s130, %s131
    %p135 = pneg %p129
    %p136 = scmp.eq.s32.totalorder %s12, 1
    %p137 = por %p135, %p136
    %p138 = scmp.ne.s32.totalorder %s130, %s133
    %p139 = scmp.eq.s32.totalorder %s12, 0
    %p140 = por %p138, %p139
    %p141 = scmp.ne.s32.totalorder %s130, %s133
    %p142 = scmp.eq.s32.totalorder %s17, 1
    %p143 = por %p141, %p142
    %p144 = scmp.ne.s32.totalorder %s133, %s134
    %p145 = scmp.eq.s32.totalorder %s17, 0
    %p146 = por %p144, %p145
    %p147 = scmp.ne.s32.totalorder %s133, %s134
    %p148 = scmp.eq.s32.totalorder %s18, 1
    %p149 = por %p147, %p148
    %p151 = scmp.ne.s32.totalorder %s134, %s150
    %p152 = scmp.eq.s32.totalorder %s18, 0
    %p153 = por %p151, %p152
    %s155 = sadd.s32 %s154, 1
    %p158 = scmp.eq.s32.totalorder %s12, 1
    %p159 = scmp.ne.s32.totalorder %s154, %s156
    %p160 = scmp.eq.s32.totalorder %s12, 0
    %p161 = por %p159, %p160
    %p162 = scmp.ne.s32.totalorder %s154, %s156
    %p163 = scmp.eq.s32.totalorder %s17, 1
    %p164 = por %p162, %p163
    %p165 = scmp.ne.s32.totalorder %s156, %s157
    %p166 = scmp.eq.s32.totalorder %s17, 0
    %p167 = por %p165, %p166
    %p168 = scmp.ne.s32.totalorder %s156, %s157
    %p169 = scmp.eq.s32.totalorder %s18, 1
    %p170 = por %p168, %p169
    %p172 = scmp.ne.s32.totalorder %s157, %s171
    %p173 = scmp.eq.s32.totalorder %s18, 0
    %p174 = por %p172, %p173
    %s175 = ssub.s32 %s19, %s31
    %s176 = ssub.s32 %s20, %s27
    %s177 = sor.u32 %s175, %s176
    %p178 = scmp.eq.s32.totalorder %s177, 0
    %s180 = sadd.s32 %s179, 1
    %s181 = scalar_select %p178, %s179, %s180
    %p184 = pneg %p178
    %p185 = scmp.eq.s32.totalorder %s12, 1
    %p186 = por %p184, %p185
    %p187 = scmp.ne.s32.totalorder %s179, %s182
    %p188 = scmp.eq.s32.totalorder %s12, 0
    %p189 = por %p187, %p188
    %p190 = scmp.ne.s32.totalorder %s179, %s182
    %p191 = scmp.eq.s32.totalorder %s17, 1
    %p192 = por %p190, %p191
    %p193 = scmp.ne.s32.totalorder %s182, %s183
    %p194 = scmp.eq.s32.totalorder %s17, 0
    %p195 = por %p193, %p194
    %p196 = scmp.ne.s32.totalorder %s182, %s183
    %p197 = scmp.eq.s32.totalorder %s18, 1
    %p198 = por %p196, %p197
    %p200 = scmp.ne.s32.totalorder %s183, %s199
    %p201 = scmp.eq.s32.totalorder %s18, 0
    %p202 = por %p200, %p201
    %p203 = scmp.le.s32.totalorder 1, %s12
    %p204 = scmp.lt.s32.totalorder %s12, 3
    %p205 = pnand %p203, %p204
    %p206 = pneg %p205
    // Predicated region
    $region9: #{_lambda_.1} parent=5 // pred_check
      _
    $region10: #{_lambda_.1} parent=5 // pred_check_branch
      %208 = sbr.rel (%p205) target = $region12
    $region11: #{_lambda_.1} parent=5 // pred_region
      %s209 = ssub.s32 %s12, 1
      // Predicated region
      $region13: #{_lambda_.1} parent=11 // pred_check
        %p210 = pneg %p73
      $region14: #{_lambda_.1} parent=11 // pred_check_branch
        %212 = sbr.rel (%p210) target = $region16
      $region15: #{_lambda_.1} parent=11 // pred_region
        _
      $region16: #{_lambda_.1} parent=11 // pred_fallthru
        _
      // Predicated region
      $region17: #{_lambda_.1} parent=11 // pred_check
        %p213 = pneg %p94
      $region18: #{_lambda_.1} parent=11 // pred_check_branch
        %215 = sbr.rel (%p213) target = $region20
      $region19: #{_lambda_.1} parent=11 // pred_region
        _
      $region20: #{_lambda_.1} parent=11 // pred_fallthru
        _
      // Predicated region
      $region21: #{_lambda_.1} parent=11 // pred_check
        %p216 = pneg %p146
      $region22: #{_lambda_.1} parent=11 // pred_check_branch
        %218 = sbr.rel (%p216) target = $region24
      $region23: #{_lambda_.1} parent=11 // pred_region
        %s219 = smul.u32 2, %s22
        %p220 = scmp.lt.s32.totalorder %s219, 1
        %s221 = scalar_select %p220, %s219, 1
        %s222 = smul.addr %s221, 4
        %s223 = scalar_lea.vmem %s4, %s222
        %s224 = smul.u32 2, %s22
      $region24: #{_lambda_.1} parent=11 // pred_fallthru
        _
      // Predicated region
      $region25: #{_lambda_.1} parent=11 // pred_check
        %p225 = pneg %p167
      $region26: #{_lambda_.1} parent=11 // pred_check_branch
        %227 = sbr.rel (%p225) target = $region28
      $region27: #{_lambda_.1} parent=11 // pred_region
        _
      $region28: #{_lambda_.1} parent=11 // pred_fallthru
        _
    $region12: #{_lambda_.1} parent=5 // pred_fallthru
      _
    %p228 = scmp.lt.s32.totalorder %s12, 2
    // Predicated region
    $region29: #{_lambda_.1} parent=5 // pred_check
      %p229 = pneg %p228
    $region30: #{_lambda_.1} parent=5 // pred_check_branch
      %231 = sbr.rel (%p229) target = $region32
    $region31: #{_lambda_.1} parent=5 // pred_region
      // Predicated region
      $region33: #{_lambda_.1} parent=31 // pred_check
        %p232 = pneg %p46
      $region34: #{_lambda_.1} parent=31 // pred_check_branch
        %234 = sbr.rel (%p232) target = $region36
      $region35: #{_lambda_.1} parent=31 // pred_region
        %s235 = smul.u32 2, %s20
        %p236 = scmp.lt.s32.totalorder %s19, 1
        %s237 = scalar_select %p236, %s19, 1
        %p238 = scmp.lt.s32.totalorder %s235, 1
        %s239 = scalar_select %p238, %s235, 1
        %s240 = smul.addr %s237, 4
        %s241 = sadd.s32 %s239, %s240
        %s242 = smul.addr %s241, 4
        %s243 = scalar_lea.vmem %s0, %s242
        %s244 = smul.u32 2, %s20
      $region36: #{_lambda_.1} parent=31 // pred_fallthru
        _
      // Predicated region
      $region37: #{_lambda_.1} parent=31 // pred_check
        %p245 = pneg %p114
      $region38: #{_lambda_.1} parent=31 // pred_check_branch
        %247 = sbr.rel (%p245) target = $region40
      $region39: #{_lambda_.1} parent=31 // pred_region
        %p248 = scmp.lt.s32.totalorder %s19, 1
        %s249 = scalar_select %p248, %s19, 1
        %s250 = smul.addr %s249, 4
        %s251 = smul.addr %s250, 4
        %s252 = scalar_lea.vmem %s3, %s251
      $region40: #{_lambda_.1} parent=31 // pred_fallthru
        _
    $region32: #{_lambda_.1} parent=5 // pred_fallthru
      _
    %p253 = scmp.le.s32.totalorder 1, %s12
    %p254 = scmp.lt.s32.totalorder %s12, 3
    %p255 = pnand %p253, %p254
    %p256 = pneg %p255
    // Predicated region
    $region41: #{_lambda_.1} parent=5 // pred_check
      _
    $region42: #{_lambda_.1} parent=5 // pred_check_branch
      %258 = sbr.rel (%p255) target = $region44
    $region43: #{_lambda_.1} parent=5 // pred_region
      %s259 = ssub.s32 %s12, 1
      %s260 = smul.u32 2, %s22
      %p261 = scmp.lt.s32.totalorder %s21, 1
      %s262 = scalar_select %p261, %s21, 1
      %p263 = scmp.lt.s32.totalorder %s260, 1
      %s264 = scalar_select %p263, %s260, 1
      %s265 = smul.addr %s262, 4
      %s266 = sadd.s32 %s264, %s265
      %s267 = smul.addr %s266, 4
      %s268 = scalar_lea.vmem %s0, %s267
      %p269 = pneg %p52
      %p270 = pneg %p49
      %p271 = pneg %p73
      %p272 = pneg %p70
      %p273 = pneg %p94
      %p274 = pneg %p91
      %p275 = scmp.lt.s32.totalorder %s21, 1
      %s276 = scalar_select %p275, %s21, 1
      %s277 = smul.addr %s276, 4
      %s278 = smul.addr %s277, 4
      %s279 = scalar_lea.vmem %s3, %s278
      %p280 = pneg %p120
      %p281 = pneg %p117
      %s282 = smul.u32 2, %s22
      %p283 = scmp.lt.s32.totalorder %s282, 1
      %s284 = scalar_select %p283, %s282, 1
      %s285 = smul.addr %s284, 4
      %s286 = scalar_lea.vmem %s4, %s285
      %p287 = pneg %p146
      %p288 = pneg %p143
      %p289 = pneg %p167
      %p290 = pneg %p164
      %p291 = pneg %p195
      %p292 = pneg %p192
      %s293 = smul.u32 2, %s22
      %p294 = scmp.lt.s32.totalorder %s21, 1
      %s295 = scalar_select %p294, %s21, 1
      %p296 = scmp.lt.s32.totalorder %s293, 1
      %s297 = scalar_select %p296, %s293, 1
      %s298 = smul.addr %s295, 8
      %s299 = sadd.s32 %s297, %s298
      %s300 = smul.addr %s299, 4
      %s301 = scalar_lea.vmem %s6, %s300
      %s302 = smul.u32 2, %s22
      %p303 = scmp.lt.s32.totalorder %s21, 1
      %s304 = scalar_select %p303, %s21, 1
      %p305 = scmp.lt.s32.totalorder %s302, 1
      %s306 = scalar_select %p305, %s302, 1
      %s307 = smul.addr %s304, 4
      %s308 = sadd.s32 %s306, %s307
      %s309 = smul.addr %s308, 4
      %s310 = scalar_lea.vmem %s0, %s309
      %s311 = smul.u32 2, %s22
      %p312 = scmp.lt.s32.totalorder %s21, 1
      %s313 = scalar_select %p312, %s21, 1
      %s314 = smul.addr %s313, 4
      %s315 = smul.addr %s314, 4
      %s316 = scalar_lea.vmem %s3, %s315
      %s317 = smul.u32 2, %s22
      %p318 = scmp.lt.s32.totalorder %s317, 1
      %s319 = scalar_select %p318, %s317, 1
      %s320 = smul.addr %s319, 4
      %s321 = scalar_lea.vmem %s4, %s320
      %s322 = smul.u32 2, %s22
      %s323 = smul.u32 2, %s22
      %p324 = scmp.lt.s32.totalorder %s21, 1
      %s325 = scalar_select %p324, %s21, 1
      %p326 = scmp.lt.s32.totalorder %s323, 1
      %s327 = scalar_select %p326, %s323, 1
      %s328 = smul.addr %s325, 8
      %s329 = sadd.s32 %s327, %s328
      %s330 = smul.addr %s329, 4
      %s331 = scalar_lea.vmem %s6, %s330
      %s332 = smul.u32 2, %s22
      %v334 = vld [vmem:[%s1] sm:$0xf]
      %v335 = vld [vmem:[%s1 + $0x4] sm:$0xf]
      %v336 = vld [vmem:[%s1 + $0x8] sm:$0xf]
      %v337 = vld [vmem:[%s1 + $0xc] sm:$0xf]
      %v338 = vld [vmem:[%s310] sm:$0xff]
      %v339 = vld [vmem:[%s310 + $0x8] sm:$0xff]
      %v340 = vld [vmem:[%s2] sm:$0xff]
      %v341 = vld [vmem:[%s2 + $0x8] sm:$0xff]
      %v342 = vld [vmem:[%s2 + $0x10] sm:$0xff]
      %v343 = vld [vmem:[%s2 + $0x18] sm:$0xff]
      %345 = vset.pattern.permute.xlu0 0
      %346 = vperm.xlu0 %345, %v340
      %v347 = vpop.permute.xlu0 %346
      %350 = vset.pattern.permute.xlu0 0
      %351 = vperm.xlu0 %350, %v341
      %v352 = vpop.permute.xlu0 %351
      %355 = vset.pattern.permute.xlu0 0
      %356 = vperm.xlu0 %355, %v342
      %v357 = vpop.permute.xlu0 %356
      %360 = vset.pattern.permute.xlu0 0
      %361 = vperm.xlu0 %360, %v343
      %v362 = vpop.permute.xlu0 %361
      %v368 = vunpack.c.l.b16 %v334
      %v369 = vunpack.c.l.b16 %v335
      %v370 = vunpack.c.l.b16 %v336
      %v371 = vunpack.c.l.b16 %v337
      %v372 = vpack.c.b16 %v369, %v368
      %v373 = vpack.c.b16 %v371, %v370
      %v376 = vunpack.c.l.b16 %v338
      %v377 = vunpack.c.h.b16 %v338
      %v378 = vunpack.c.l.b16 %v339
      %v379 = vunpack.c.h.b16 %v339
      %v380 = vpack.c.b16 %v378, %v376
      %v381 = vpack.c.b16 %v379, %v377
      %vm384 = vcmask 130048
      %v386 = vsel %vm384, %v372, 0
      %v389 = vsel %vm384, %v373, 0
      %391 = vmatprep.subr.bf16.mxu0 %v381
      %392 = vmatpush1.bf16.msra.mxu0 %v380
      %393 = vmatprep.subr.bf16.mxu0 0
      %394 = vmatpush1.bf16.msra.mxu0 0
      %395 = vmatprep.subr.bf16.mxu0 0
      %396 = vmatpush1.bf16.msra.mxu0 0
      %397 = vmatprep.subr.bf16.mxu0 0
      %398 = vmatpush1.bf16.msra.mxu0 0
      %399 = vmatprep.subr.bf16.mxu0 0
      %400 = vmatpush1.bf16.msra.mxu0 0
      %401 = vmatprep.subr.bf16.mxu0 0
      %402 = vmatpush1.bf16.msra.mxu0 0
      %403 = vmatprep.subr.bf16.mxu0 0
      %404 = vmatpush1.bf16.msra.mxu0 0
      %405 = vmatprep.subr.bf16.mxu0 0
      %406 = vmatpush1.bf16.msra.mxu0 0
      %407 = vmatprep.subr.bf16.mxu0 0
      %408 = vmatpush1.bf16.msra.mxu0 0
      %409 = vmatprep.subr.bf16.mxu0 0
      %410 = vmatpush1.bf16.msra.mxu0 0
      %411 = vmatprep.subr.bf16.mxu0 0
      %412 = vmatpush1.bf16.msra.mxu0 0
      %413 = vmatprep.subr.bf16.mxu0 0
      %414 = vmatpush1.bf16.msra.mxu0 0
      %415 = vmatprep.subr.bf16.mxu0 0
      %416 = vmatpush1.bf16.msra.mxu0 0
      %417 = vmatprep.subr.bf16.mxu0 0
      %418 = vmatpush1.bf16.msra.mxu0 0
      %419 = vmatprep.subr.bf16.mxu0 0
      %420 = vmatpush1.bf16.msra.mxu0 0
      %421 = vmatprep.subr.bf16.mxu0 0
      %422 = vmatpush1.bf16.msra.mxu0 0
      %423 = vmatprep.mubr.bf16.mxu0 0
      %424 = vmatmul.mubr.bf16.gmra.mrb[0].mxu0 %v386
      %v425 = vpop.f32.mrb[0].mxu0
      %v426 = vadd.f32 %v347, %v425
      %v427 = vpop.f32.mrb[0].mxu0
      %v428 = vadd.f32 %v347, %v427
      %v429 = vpop.f32.mrb[0].mxu0
      %v430 = vadd.f32 %v352, %v429
      %v431 = vpop.f32.mrb[0].mxu0
      %v432 = vadd.f32 %v352, %v431
      %433 = vmatprep.mubr.bf16.mxu0 0
      %434 = vmatmul.mubr.bf16.gmra.mrb[0].mxu0 %v389
      %v435 = vpop.f32.mrb[0].mxu0
      %v436 = vadd.f32 %v357, %v435
      %v437 = vpop.f32.mrb[0].mxu0
      %v438 = vadd.f32 %v357, %v437
      %v439 = vpop.f32.mrb[0].mxu0
      %v440 = vadd.f32 %v362, %v439
      %v441 = vpop.f32.mrb[0].mxu0
      %v442 = vadd.f32 %v362, %v441
      %443 = vdwg.mxu0
      %v444 = vmax.f32 %v426, 0.0
      %v445 = vmax.f32 %v428, 0.0
      %v446 = vmax.f32 %v430, 0.0
      %v447 = vmax.f32 %v432, 0.0
      %v448 = vmax.f32 %v436, 0.0
      %v449 = vmax.f32 %v438, 0.0
      %v450 = vmax.f32 %v440, 0.0
      %v451 = vmax.f32 %v442, 0.0
      %v452 = vld [vmem:[%s316] sm:$0xf]
      %v453 = vld [vmem:[%s316 + $0x4] sm:$0xf]
      %v454 = vld [vmem:[%s316 + $0x8] sm:$0xf]
      %v455 = vld [vmem:[%s316 + $0xc] sm:$0xf]
      %v456 = vld [vmem:[%s321] sm:$0xff]
      %v457 = vld [vmem:[%s321 + $0x8] sm:$0xff]
      %v458 = vld [vmem:[%s5] sm:$0xff]
      %v459 = vld [vmem:[%s5 + $0x8] sm:$0xff]
      %v460 = vld [vmem:[%s5 + $0x10] sm:$0xff]
      %v461 = vld [vmem:[%s5 + $0x18] sm:$0xff]
      %463 = vset.pattern.permute.xlu0 0
      %464 = vperm.xlu0 %463, %v458
      %v465 = vpop.permute.xlu0 %464
      %468 = vset.pattern.permute.xlu0 0
      %469 = vperm.xlu0 %468, %v459
      %v470 = vpop.permute.xlu0 %469
      %473 = vset.pattern.permute.xlu0 0
      %474 = vperm.xlu0 %473, %v460
      %v475 = vpop.permute.xlu0 %474
      %478 = vset.pattern.permute.xlu0 0
      %479 = vperm.xlu0 %478, %v461
      %v480 = vpop.permute.xlu0 %479
      %v486 = vunpack.c.l.b16 %v452
      %v487 = vunpack.c.l.b16 %v453
      %v488 = vunpack.c.l.b16 %v454
      %v489 = vunpack.c.l.b16 %v455
      %v490 = vpack.c.b16 %v487, %v486
      %v491 = vpack.c.b16 %v489, %v488
      %v494 = vunpack.c.l.b16 %v456
      %v495 = vunpack.c.h.b16 %v456
      %v496 = vunpack.c.l.b16 %v457
      %v497 = vunpack.c.h.b16 %v457
      %v498 = vpack.c.b16 %v496, %v494
      %v499 = vpack.c.b16 %v497, %v495
      %v503 = vsel %vm384, %v490, 0
      %v506 = vsel %vm384, %v491, 0
      %508 = vmatprep.subr.bf16.mxu0 %v499
      %509 = vmatpush1.bf16.msra.mxu0 %v498
      %510 = vmatprep.subr.bf16.mxu0 0
      %511 = vmatpush1.bf16.msra.mxu0 0
      %512 = vmatprep.subr.bf16.mxu0 0
      %513 = vmatpush1.bf16.msra.mxu0 0
      %514 = vmatprep.subr.bf16.mxu0 0
      %515 = vmatpush1.bf16.msra.mxu0 0
      %516 = vmatprep.subr.bf16.mxu0 0
      %517 = vmatpush1.bf16.msra.mxu0 0
      %518 = vmatprep.subr.bf16.mxu0 0
      %519 = vmatpush1.bf16.msra.mxu0 0
      %520 = vmatprep.subr.bf16.mxu0 0
      %521 = vmatpush1.bf16.msra.mxu0 0
      %522 = vmatprep.subr.bf16.mxu0 0
      %523 = vmatpush1.bf16.msra.mxu0 0
      %524 = vmatprep.subr.bf16.mxu0 0
      %525 = vmatpush1.bf16.msra.mxu0 0
      %526 = vmatprep.subr.bf16.mxu0 0
      %527 = vmatpush1.bf16.msra.mxu0 0
      %528 = vmatprep.subr.bf16.mxu0 0
      %529 = vmatpush1.bf16.msra.mxu0 0
      %530 = vmatprep.subr.bf16.mxu0 0
      %531 = vmatpush1.bf16.msra.mxu0 0
      %532 = vmatprep.subr.bf16.mxu0 0
      %533 = vmatpush1.bf16.msra.mxu0 0
      %534 = vmatprep.subr.bf16.mxu0 0
      %535 = vmatpush1.bf16.msra.mxu0 0
      %536 = vmatprep.subr.bf16.mxu0 0
      %537 = vmatpush1.bf16.msra.mxu0 0
      %538 = vmatprep.subr.bf16.mxu0 0
      %539 = vmatpush1.bf16.msra.mxu0 0
      %540 = vmatprep.mubr.bf16.mxu0 0
      %541 = vmatmul.mubr.bf16.gmra.mrb[0].mxu0 %v503
      %v542 = vpop.f32.mrb[0].mxu0
      %v543 = vadd.f32 %v465, %v542
      %v544 = vpop.f32.mrb[0].mxu0
      %v545 = vadd.f32 %v465, %v544
      %v546 = vpop.f32.mrb[0].mxu0
      %v547 = vadd.f32 %v470, %v546
      %v548 = vpop.f32.mrb[0].mxu0
      %v549 = vadd.f32 %v470, %v548
      %550 = vmatprep.mubr.bf16.mxu0 0
      %551 = vmatmul.mubr.bf16.gmra.mrb[0].mxu0 %v506
      %v552 = vpop.f32.mrb[0].mxu0
      %v553 = vadd.f32 %v475, %v552
      %v554 = vpop.f32.mrb[0].mxu0
      %v555 = vadd.f32 %v475, %v554
      %v556 = vpop.f32.mrb[0].mxu0
      %v557 = vadd.f32 %v480, %v556
      %v558 = vpop.f32.mrb[0].mxu0
      %v559 = vadd.f32 %v480, %v558
      %560 = vdwg.mxu0
      %v561 = vmax.f32 %v543, 0.0
      %v562 = vmax.f32 %v545, 0.0
      %v563 = vmax.f32 %v547, 0.0
      %v564 = vmax.f32 %v549, 0.0
      %v565 = vmax.f32 %v553, 0.0
      %v566 = vmax.f32 %v555, 0.0
      %v567 = vmax.f32 %v557, 0.0
      %v568 = vmax.f32 %v559, 0.0
      %v569 = vadd.f32 %v444, %v561
      %v570 = vadd.f32 %v445, %v562
      %v571 = vadd.f32 %v446, %v563
      %v572 = vadd.f32 %v447, %v564
      %v573 = vadd.f32 %v448, %v565
      %v574 = vadd.f32 %v449, %v566
      %v575 = vadd.f32 %v450, %v567
      %v576 = vadd.f32 %v451, %v568
      %v577 = vpack.c.bf16 %v571, %v569
      %v578 = vpack.c.bf16 %v572, %v570
      %v579 = vpack.c.bf16 %v575, %v573
      %v580 = vpack.c.bf16 %v576, %v574
      %v585 = vunpack.c.l.b16 %v577
      %v586 = vunpack.c.l.b16 %v578
      %v587 = vunpack.c.h.b16 %v577
      %v588 = vunpack.c.h.b16 %v578
      %v589 = vunpack.c.l.b16 %v579
      %v590 = vunpack.c.l.b16 %v580
      %v591 = vunpack.c.h.b16 %v579
      %v592 = vunpack.c.h.b16 %v580
      %v593 = vpack.c.b16 %v586, %v585
      %v594 = vpack.c.b16 %v588, %v587
      %v595 = vpack.c.b16 %v590, %v589
      %v596 = vpack.c.b16 %v592, %v591
      %601 = vst [vmem:[%s331] sm:$0xff] %v593
      %602 = vst [vmem:[%s331 + $0x8] sm:$0xff] %v594
      %603 = vst [vmem:[%s331 + $0x10] sm:$0xff] %v595
      %604 = vst [vmem:[%s331 + $0x18] sm:$0xff] %v596
      %s605 = smul.u32 2, %s22
      %p606 = scmp.lt.s32.totalorder %s21, 1
      %s607 = scalar_select %p606, %s21, 1
      %p608 = scmp.lt.s32.totalorder %s605, 1
      %s609 = scalar_select %p608, %s605, 1
      %s610 = smul.addr %s607, 8
      %s611 = sadd.s32 %s609, %s610
      %s612 = smul.addr %s611, 4
      %s613 = scalar_lea.vmem %s6, %s612
      // Predicated region
      $region45: #{_lambda_.1} parent=43 // pred_check
        %p614 = pneg %p192
      $region46: #{_lambda_.1} parent=43 // pred_check_branch
        %616 = sbr.rel (%p614) target = $region48
      $region47: #{_lambda_.1} parent=43 // pred_region
        %s617 = smul.u32 2, %s22
      $region48: #{_lambda_.1} parent=43 // pred_fallthru
        _
    $region44: #{_lambda_.1} parent=5 // pred_fallthru
      _
    %p618 = scmp.le.s32.totalorder 2, %s12
    // Predicated region
    $region49: #{_lambda_.1} parent=5 // pred_check
      %p619 = pneg %p618
    $region50: #{_lambda_.1} parent=5 // pred_check_branch
      %621 = sbr.rel (%p619) target = $region52
    $region51: #{_lambda_.1} parent=5 // pred_region
      %s622 = ssub.s32 %s12, 2
      // Predicated region
      $region53: #{_lambda_.1} parent=51 // pred_check
        %p623 = pneg %p198
      $region54: #{_lambda_.1} parent=51 // pred_check_branch
        %625 = sbr.rel (%p623) target = $region56
      $region55: #{_lambda_.1} parent=51 // pred_region
        %s626 = smul.u32 2, %s24
        %p627 = scmp.lt.s32.totalorder %s23, 1
        %s628 = scalar_select %p627, %s23, 1
        %p629 = scmp.lt.s32.totalorder %s626, 1
        %s630 = scalar_select %p629, %s626, 1
        %s631 = smul.addr %s628, 8
        %s632 = sadd.s32 %s630, %s631
        %s633 = smul.addr %s632, 4
        %s634 = scalar_lea.vmem %s6, %s633
      $region56: #{_lambda_.1} parent=51 // pred_fallthru
        _
    $region52: #{_lambda_.1} parent=5 // pred_fallthru
      _
  $region6: #{_lambda_.1} parent=0 // loop_footer
    %s16 = sadd.s32 1, %s12
  $region7: #{_lambda_.1} parent=0 // loop_footer_branch
    %11 = sbr.rel target = $region3
  $region8: #{_lambda_.1} parent=0 // loop_exit
    _

</llo_original>
